<compile_context>
chip_gen: v7x
topology: tpu7x:2x2x1
jax: 0.10.0
libtpu: 0.0.40
codegen_flags: <defaults>
</compile_context>

<pallas_src>
import functools

import jax
import jax.numpy as jnp
from jax.experimental import pallas as pl
from jax.experimental.pallas import tpu as pltpu


def _round_up(x, m):
    return (x + m - 1) // m * m


def _mlp_kernel(num_classes,
                x_ref,
                w1_ref, b1_ref,
                w2_ref, b2_ref,
                w3_ref, b3_ref,
                w4_ref, b4_ref,
                wo_ref, bo_ref,
                logits_ref, logprobs_ref):
    """One batch tile: 4x (Linear+ReLU) -> Linear -> log_softmax (classes padded to 128)."""

    def layer(h, w_ref, b_ref):
        # bf16 x bf16 -> f32 accumulation on the MXU; bias add + ReLU in f32,
        # then cast back to bf16 for the next matmul.
        z = jnp.dot(h, w_ref[...], preferred_element_type=jnp.float32) + b_ref[...]
        return jnp.maximum(z, 0.0).astype(jnp.bfloat16)

    h = x_ref[...]                       # bf16 (batch_tile, F_pad)
    h = layer(h, w1_ref, b1_ref)
    h = layer(h, w2_ref, b2_ref)
    h = layer(h, w3_ref, b3_ref)
    h = layer(h, w4_ref, b4_ref)

    logits = jnp.dot(h, wo_ref[...], preferred_element_type=jnp.float32) + bo_ref[...]
    logits_ref[...] = logits.astype(logits_ref.dtype)

    # Numerically-stable log_softmax over the real classes only; columns
    # >= num_classes are lane padding and are excluded from max/sum.
    col = jax.lax.broadcasted_iota(jnp.int32, logits.shape, 1)
    valid = col < num_classes
    masked = jnp.where(valid, logits, jnp.float32(-1e30))
    m = jnp.max(masked, axis=1, keepdims=True)
    shifted = logits - m
    lse = jnp.log(jnp.sum(jnp.where(valid, jnp.exp(shifted), 0.0),
                          axis=1, keepdims=True))
    logprobs_ref[...] = (shifted - lse).astype(logprobs_ref.dtype)


def mlp_forward(x, params, *, batch_tile=None):
    """params: dict with w1..w4, wo shaped (in, out) and b1..b4, bo shaped (1, out), f32."""
    B, F = x.shape
    C = params["wo"].shape[1]
    F_pad = _round_up(F, 128)
    C_pad = _round_up(C, 128)

    if batch_tile is None:
        # Fill MXU rows; cap at 512 rows/step to stay well inside v7x's 32 MiB scoped VMEM.
        batch_tile = min(_round_up(B, 8), 512)
    B_pad = _round_up(B, batch_tile)
    n_tiles = B_pad // batch_tile

    # Pad + cast matmul inputs to bf16 (accumulation stays f32 inside the kernel).
    x_p = jnp.pad(x, ((0, B_pad - B), (0, F_pad - F))).astype(jnp.bfloat16)
    w1 = jnp.pad(params["w1"], ((0, F_pad - F), (0, 0))).astype(jnp.bfloat16)
    w2 = params["w2"].astype(jnp.bfloat16)
    w3 = params["w3"].astype(jnp.bfloat16)
    w4 = params["w4"].astype(jnp.bfloat16)
    wo = jnp.pad(params["wo"], ((0, 0), (0, C_pad - C))).astype(jnp.bfloat16)
    b1, b2, b3, b4 = (params[f"b{k}"] for k in "1234")   # stay f32
    bo = jnp.pad(params["bo"], ((0, 0), (0, C_pad - C)))  # f32, zero bias on padded cols

    def x_map(i):
        return (i, 0)

    def bcast_map(i):
        return (0, 0)

    full = lambda arr: pl.BlockSpec(arr.shape, bcast_map)

    in_specs = [
        pl.BlockSpec((batch_tile, F_pad), x_map),
        full(w1), full(b1),
        full(w2), full(b2),
        full(w3), full(b3),
        full(w4), full(b4),
        full(wo), full(bo),
    ]
    out_specs = [
        pl.BlockSpec((batch_tile, C_pad), x_map),
        pl.BlockSpec((batch_tile, C_pad), x_map),
    ]

    logits_p, logprobs_p = pl.pallas_call(
        functools.partial(_mlp_kernel, C),
        out_shape=(
            jax.ShapeDtypeStruct((B_pad, C_pad), jnp.float32),
            jax.ShapeDtypeStruct((B_pad, C_pad), jnp.float32),
        ),
        grid_spec=pltpu.PrefetchScalarGridSpec(
            num_scalar_prefetch=0,
            grid=(n_tiles,),
            in_specs=in_specs,
            out_specs=out_specs,
        ),
        compiler_params=pltpu.CompilerParams(
            dimension_semantics=("parallel",)),
    )(x_p, w1, b1, w2, b2, w3, b3, w4, b4, wo, bo)

    # Slice off batch / class padding.
    return logits_p[:B, :C], logprobs_p[:B, :C]


def init_params(key, num_features, num_classes):
    """Deterministic init mimicking torch.nn.Linear default (uniform +-1/sqrt(fan_in)).
    Weights stored transposed: (in_features, out_features)."""
    dims = [num_features, 256, 128, 64, 32, num_classes]
    names = ["1", "2", "3", "4", "o"]
    params = {}
    for name, d_in, d_out in zip(names, dims[:-1], dims[1:]):
        key, kw, kb = jax.random.split(key, 3)
        bound = 1.0 / jnp.sqrt(jnp.float32(d_in))
        params[f"w{name}"] = jax.random.uniform(
            kw, (d_in, d_out), jnp.float32, -bound, bound)
        params[f"b{name}"] = jax.random.uniform(
            kb, (1, d_out), jnp.float32, -bound, bound)
    return params


def reference_forward(x, params):
    h = x
    for name in ["1", "2", "3", "4"]:
        h = jnp.maximum(h @ params[f"w{name}"] + params[f"b{name}"], 0.0)
    logits = h @ params["wo"] + params["bo"]
    return logits, jax.nn.log_softmax(logits, axis=1)


if __name__ == "__main__":
    NUM_FEATURES = 784   # MNIST flattened 28*28
    NUM_CLASSES = 10
    BATCH = 16

    key = jax.random.PRNGKey(0)
    key, kx = jax.random.split(key)
    x = jax.random.normal(kx, (BATCH, NUM_FEATURES), jnp.float32)
    params = init_params(key, NUM_FEATURES, NUM_CLASSES)

    logits, logprobs = jax.jit(mlp_forward)(x, params)
    jax.block_until_ready((logits, logprobs))

    ref_logits, ref_logprobs = reference_forward(x, params)
    # bf16 matmul inputs (f32 accumulation) => loosened tolerances vs. pure-f32 reference.
    assert jnp.allclose(logits, ref_logits, atol=5e-2, rtol=5e-2)
    assert jnp.allclose(logprobs, ref_logprobs, atol=5e-2, rtol=5e-2)

    print("KERNEL_OK")
</pallas_src>

<mosaic_0001>
module attributes {stable_mosaic.version = 11 : i64} {
  func.func @_mlp_kernel(%arg0: i32, %arg1: memref<16x896xbf16, #tpu.memory_space<vmem>>, %arg2: memref<896x256xbf16, #tpu.memory_space<vmem>>, %arg3: memref<1x256xf32, #tpu.memory_space<vmem>>, %arg4: memref<256x128xbf16, #tpu.memory_space<vmem>>, %arg5: memref<1x128xf32, #tpu.memory_space<vmem>>, %arg6: memref<128x64xbf16, #tpu.memory_space<vmem>>, %arg7: memref<1x64xf32, #tpu.memory_space<vmem>>, %arg8: memref<64x32xbf16, #tpu.memory_space<vmem>>, %arg9: memref<1x32xf32, #tpu.memory_space<vmem>>, %arg10: memref<32x128xbf16, #tpu.memory_space<vmem>>, %arg11: memref<1x128xf32, #tpu.memory_space<vmem>>, %arg12: memref<16x128xf32, #tpu.memory_space<vmem>>, %arg13: memref<16x128xf32, #tpu.memory_space<vmem>>) attributes {dimension_semantics = [#tpu.dimension_semantics<parallel>], iteration_bounds = array<i64: 1>, scalar_prefetch = 0 : i64, scratch_operands = 0 : i64, tpu.core_type = #tpu.core_type<tc>, window_params = [{transform_indices = @transform_0, window_bounds = array<i64: 16, 896>}, {pipeline_mode = #tpu.pipeline_mode<synchronous>, transform_indices = @transform_1, window_bounds = array<i64: 896, 256>}, {pipeline_mode = #tpu.pipeline_mode<synchronous>, transform_indices = @transform_2, window_bounds = array<i64: 1, 256>}, {pipeline_mode = #tpu.pipeline_mode<synchronous>, transform_indices = @transform_3, window_bounds = array<i64: 256, 128>}, {pipeline_mode = #tpu.pipeline_mode<synchronous>, transform_indices = @transform_4, window_bounds = array<i64: 1, 128>}, {pipeline_mode = #tpu.pipeline_mode<synchronous>, transform_indices = @transform_5, window_bounds = array<i64: 128, 64>}, {pipeline_mode = #tpu.pipeline_mode<synchronous>, transform_indices = @transform_6, window_bounds = array<i64: 1, 64>}, {pipeline_mode = #tpu.pipeline_mode<synchronous>, transform_indices = @transform_7, window_bounds = array<i64: 64, 32>}, {pipeline_mode = #tpu.pipeline_mode<synchronous>, transform_indices = @transform_8, window_bounds = array<i64: 1, 32>}, {pipeline_mode = #tpu.pipeline_mode<synchronous>, transform_indices = @transform_9, window_bounds = array<i64: 32, 128>}, {pipeline_mode = #tpu.pipeline_mode<synchronous>, transform_indices = @transform_10, window_bounds = array<i64: 1, 128>}, {transform_indices = @transform_11, window_bounds = array<i64: 16, 128>}, {transform_indices = @transform_12, window_bounds = array<i64: 16, 128>}]} {
    %c0 = arith.constant 0 : index
    %c0_0 = arith.constant 0 : index
    %0 = vector.load %arg1[%c0, %c0_0] : memref<16x896xbf16, #tpu.memory_space<vmem>>, vector<16x896xbf16>
    %c0_1 = arith.constant 0 : index
    %c0_2 = arith.constant 0 : index
    %1 = vector.load %arg2[%c0_1, %c0_2] : memref<896x256xbf16, #tpu.memory_space<vmem>>, vector<896x256xbf16>
    %cst = arith.constant dense<0.000000e+00> : vector<16x256xf32>
    %2 = tpu.matmul %0, %1, %cst {dimension_numbers = #tpu.dot_dimension_numbers<[1], [0], [0], [1], [0, 0, 1, 1], [], []>} : vector<16x896xbf16>, vector<896x256xbf16>, vector<16x256xf32> -> vector<16x256xf32>
    %c0_3 = arith.constant 0 : index
    %c0_4 = arith.constant 0 : index
    %3 = vector.load %arg3[%c0_3, %c0_4] : memref<1x256xf32, #tpu.memory_space<vmem>>, vector<1x256xf32>
    %4 = vector.broadcast %3 : vector<1x256xf32> to vector<16x256xf32>
    %5 = arith.addf %2, %4 : vector<16x256xf32>
    %cst_5 = arith.constant 0.000000e+00 : f32
    %6 = vector.broadcast %cst_5 : f32 to vector<16x256xf32>
    %7 = arith.maximumf %5, %6 : vector<16x256xf32>
    %8 = arith.truncf %7 : vector<16x256xf32> to vector<16x256xbf16>
    %c0_6 = arith.constant 0 : index
    %c0_7 = arith.constant 0 : index
    %9 = vector.load %arg4[%c0_6, %c0_7] : memref<256x128xbf16, #tpu.memory_space<vmem>>, vector<256x128xbf16>
    %cst_8 = arith.constant dense<0.000000e+00> : vector<16x128xf32>
    %10 = tpu.matmul %8, %9, %cst_8 {dimension_numbers = #tpu.dot_dimension_numbers<[1], [0], [0], [1], [0, 0, 1, 1], [], []>} : vector<16x256xbf16>, vector<256x128xbf16>, vector<16x128xf32> -> vector<16x128xf32>
    %c0_9 = arith.constant 0 : index
    %c0_10 = arith.constant 0 : index
    %11 = vector.load %arg5[%c0_9, %c0_10] : memref<1x128xf32, #tpu.memory_space<vmem>>, vector<1x128xf32>
    %12 = vector.broadcast %11 : vector<1x128xf32> to vector<16x128xf32>
    %13 = arith.addf %10, %12 : vector<16x128xf32>
    %cst_11 = arith.constant 0.000000e+00 : f32
    %14 = vector.broadcast %cst_11 : f32 to vector<16x128xf32>
    %15 = arith.maximumf %13, %14 : vector<16x128xf32>
    %16 = arith.truncf %15 : vector<16x128xf32> to vector<16x128xbf16>
    %c0_12 = arith.constant 0 : index
    %c0_13 = arith.constant 0 : index
    %17 = vector.load %arg6[%c0_12, %c0_13] : memref<128x64xbf16, #tpu.memory_space<vmem>>, vector<128x64xbf16>
    %cst_14 = arith.constant dense<0.000000e+00> : vector<16x64xf32>
    %18 = tpu.matmul %16, %17, %cst_14 {dimension_numbers = #tpu.dot_dimension_numbers<[1], [0], [0], [1], [0, 0, 1, 1], [], []>} : vector<16x128xbf16>, vector<128x64xbf16>, vector<16x64xf32> -> vector<16x64xf32>
    %c0_15 = arith.constant 0 : index
    %c0_16 = arith.constant 0 : index
    %19 = vector.load %arg7[%c0_15, %c0_16] : memref<1x64xf32, #tpu.memory_space<vmem>>, vector<1x64xf32>
    %20 = vector.broadcast %19 : vector<1x64xf32> to vector<16x64xf32>
    %21 = arith.addf %18, %20 : vector<16x64xf32>
    %cst_17 = arith.constant 0.000000e+00 : f32
    %22 = vector.broadcast %cst_17 : f32 to vector<16x64xf32>
    %23 = arith.maximumf %21, %22 : vector<16x64xf32>
    %24 = arith.truncf %23 : vector<16x64xf32> to vector<16x64xbf16>
    %c0_18 = arith.constant 0 : index
    %c0_19 = arith.constant 0 : index
    %25 = vector.load %arg8[%c0_18, %c0_19] : memref<64x32xbf16, #tpu.memory_space<vmem>>, vector<64x32xbf16>
    %cst_20 = arith.constant dense<0.000000e+00> : vector<16x32xf32>
    %26 = tpu.matmul %24, %25, %cst_20 {dimension_numbers = #tpu.dot_dimension_numbers<[1], [0], [0], [1], [0, 0, 1, 1], [], []>} : vector<16x64xbf16>, vector<64x32xbf16>, vector<16x32xf32> -> vector<16x32xf32>
    %c0_21 = arith.constant 0 : index
    %c0_22 = arith.constant 0 : index
    %27 = vector.load %arg9[%c0_21, %c0_22] : memref<1x32xf32, #tpu.memory_space<vmem>>, vector<1x32xf32>
    %28 = vector.broadcast %27 : vector<1x32xf32> to vector<16x32xf32>
    %29 = arith.addf %26, %28 : vector<16x32xf32>
    %cst_23 = arith.constant 0.000000e+00 : f32
    %30 = vector.broadcast %cst_23 : f32 to vector<16x32xf32>
    %31 = arith.maximumf %29, %30 : vector<16x32xf32>
    %32 = arith.truncf %31 : vector<16x32xf32> to vector<16x32xbf16>
    %c0_24 = arith.constant 0 : index
    %c0_25 = arith.constant 0 : index
    %33 = vector.load %arg10[%c0_24, %c0_25] : memref<32x128xbf16, #tpu.memory_space<vmem>>, vector<32x128xbf16>
    %cst_26 = arith.constant dense<0.000000e+00> : vector<16x128xf32>
    %34 = tpu.matmul %32, %33, %cst_26 {dimension_numbers = #tpu.dot_dimension_numbers<[1], [0], [0], [1], [0, 0, 1, 1], [], []>} : vector<16x32xbf16>, vector<32x128xbf16>, vector<16x128xf32> -> vector<16x128xf32>
    %c0_27 = arith.constant 0 : index
    %c0_28 = arith.constant 0 : index
    %35 = vector.load %arg11[%c0_27, %c0_28] : memref<1x128xf32, #tpu.memory_space<vmem>>, vector<1x128xf32>
    %36 = vector.broadcast %35 : vector<1x128xf32> to vector<16x128xf32>
    %37 = arith.addf %34, %36 : vector<16x128xf32>
    %c0_29 = arith.constant 0 : index
    %c0_30 = arith.constant 0 : index
    %38 = vector.load %arg12[%c0_29, %c0_30] : memref<16x128xf32, #tpu.memory_space<vmem>>, vector<16x128xf32>
    tpu.vector_store %arg12[%c0_29, %c0_30], %37 {strides = array<i32>} : memref<16x128xf32, #tpu.memory_space<vmem>>, vector<16x128xf32>,
    %39 = tpu.iota {dimensions = array<i32: 1>} : vector<16x128xi32>
    %c10_i32 = arith.constant 10 : i32
    %40 = vector.broadcast %c10_i32 : i32 to vector<16x128xi32>
    %41 = arith.cmpi slt, %39, %40 : vector<16x128xi32>
    %cst_31 = arith.constant -1.000000e+30 : f32
    %42 = vector.broadcast %cst_31 : f32 to vector<16x128xf32>
    %43 = arith.select %41, %37, %42 : vector<16x128xi1>, vector<16x128xf32>
    %cst_32 = arith.constant dense<0xFF800000> : vector<16xf32>
    %44 = vector.multi_reduction <maximumf>, %43, %cst_32 [1] : vector<16x128xf32> to vector<16xf32>
    %45 = vector.shape_cast %44 : vector<16xf32> to vector<16x1xf32>
    %46 = vector.broadcast %45 : vector<16x1xf32> to vector<16x128xf32>
    %47 = arith.subf %37, %46 : vector<16x128xf32>
    %48 = math.exp %47 : vector<16x128xf32>
    %cst_33 = arith.constant 0.000000e+00 : f32
    %49 = vector.broadcast %cst_33 : f32 to vector<16x128xf32>
    %50 = arith.select %41, %48, %49 : vector<16x128xi1>, vector<16x128xf32>
    %cst_34 = arith.constant dense<0.000000e+00> : vector<16xf32>
    %51 = vector.multi_reduction <add>, %50, %cst_34 [1] : vector<16x128xf32> to vector<16xf32>
    %52 = vector.shape_cast %51 : vector<16xf32> to vector<16x1xf32>
    %53 = math.log %52 : vector<16x1xf32>
    %54 = vector.broadcast %53 : vector<16x1xf32> to vector<16x128xf32>
    %55 = arith.subf %47, %54 : vector<16x128xf32>
    %c0_35 = arith.constant 0 : index
    %c0_36 = arith.constant 0 : index
    %56 = vector.load %arg13[%c0_35, %c0_36] : memref<16x128xf32, #tpu.memory_space<vmem>>, vector<16x128xf32>
    tpu.vector_store %arg13[%c0_35, %c0_36], %55 {strides = array<i32>} : memref<16x128xf32, #tpu.memory_space<vmem>>, vector<16x128xf32>,
    return
  }
  func.func @transform_0(%arg0: i32) -> (i32, i32) {
    %c0_i32 = arith.constant 0 : i32
    %c0_i32_0 = arith.constant 0 : i32
    return %arg0, %c0_i32 : i32, i32
  }
  func.func @transform_1(%arg0: i32) -> (i32, i32) {
    %c0_i32 = arith.constant 0 : i32
    %c0_i32_0 = arith.constant 0 : i32
    %c0_i32_1 = arith.constant 0 : i32
    return %c0_i32, %c0_i32_0 : i32, i32
  }
  func.func @transform_2(%arg0: i32) -> (i32, i32) {
    %c0_i32 = arith.constant 0 : i32
    %c0_i32_0 = arith.constant 0 : i32
    %c0_i32_1 = arith.constant 0 : i32
    return %c0_i32, %c0_i32_0 : i32, i32
  }
  func.func @transform_3(%arg0: i32) -> (i32, i32) {
    %c0_i32 = arith.constant 0 : i32
    %c0_i32_0 = arith.constant 0 : i32
    %c0_i32_1 = arith.constant 0 : i32
    return %c0_i32, %c0_i32_0 : i32, i32
  }
  func.func @transform_4(%arg0: i32) -> (i32, i32) {
    %c0_i32 = arith.constant 0 : i32
    %c0_i32_0 = arith.constant 0 : i32
    %c0_i32_1 = arith.constant 0 : i32
    return %c0_i32, %c0_i32_0 : i32, i32
  }
  func.func @transform_5(%arg0: i32) -> (i32, i32) {
    %c0_i32 = arith.constant 0 : i32
    %c0_i32_0 = arith.constant 0 : i32
    %c0_i32_1 = arith.constant 0 : i32
    return %c0_i32, %c0_i32_0 : i32, i32
  }
  func.func @transform_6(%arg0: i32) -> (i32, i32) {
    %c0_i32 = arith.constant 0 : i32
    %c0_i32_0 = arith.constant 0 : i32
    %c0_i32_1 = arith.constant 0 : i32
    return %c0_i32, %c0_i32_0 : i32, i32
  }
  func.func @transform_7(%arg0: i32) -> (i32, i32) {
    %c0_i32 = arith.constant 0 : i32
    %c0_i32_0 = arith.constant 0 : i32
    %c0_i32_1 = arith.constant 0 : i32
    return %c0_i32, %c0_i32_0 : i32, i32
  }
  func.func @transform_8(%arg0: i32) -> (i32, i32) {
    %c0_i32 = arith.constant 0 : i32
    %c0_i32_0 = arith.constant 0 : i32
    %c0_i32_1 = arith.constant 0 : i32
    return %c0_i32, %c0_i32_0 : i32, i32
  }
  func.func @transform_9(%arg0: i32) -> (i32, i32) {
    %c0_i32 = arith.constant 0 : i32
    %c0_i32_0 = arith.constant 0 : i32
    %c0_i32_1 = arith.constant 0 : i32
    return %c0_i32, %c0_i32_0 : i32, i32
  }
  func.func @transform_10(%arg0: i32) -> (i32, i32) {
    %c0_i32 = arith.constant 0 : i32
    %c0_i32_0 = arith.constant 0 : i32
    %c0_i32_1 = arith.constant 0 : i32
    return %c0_i32, %c0_i32_0 : i32, i32
  }
  func.func @transform_11(%arg0: i32) -> (i32, i32) {
    %c0_i32 = arith.constant 0 : i32
    %c0_i32_0 = arith.constant 0 : i32
    return %arg0, %c0_i32 : i32, i32
  }
  func.func @transform_12(%arg0: i32) -> (i32, i32) {
    %c0_i32 = arith.constant 0 : i32
    %c0_i32_0 = arith.constant 0 : i32
    return %arg0, %c0_i32 : i32, i32
  }
}

</mosaic_0001>

<llo_original>
// kernel: mlp_forward.1
$region0: #{mlp_forward.1}
  #allocation0 [shape = 'u32[]', space=smem, size = 0x4, offset = 0x4, fixed_abs, tag = 'smem constant byte address 0x4 - core index']
  #allocation1 [shape = 'u32[144,128]{1,0:T(1,128)}', space=vmem, size = 0x12000, scoped, tag = 'internal scratch']
  %s0 = inlined_call_operand.vmem [shape: bf16[16,896], index: 0, kind: input, shape index: {}]
  %s1 = inlined_call_operand.vmem [shape: bf16[896,256], index: 1, kind: input, shape index: {}]
  %s2 = inlined_call_operand.vmem [shape: f32[1,256], index: 2, kind: input, shape index: {}]
  %s3 = inlined_call_operand.vmem [shape: bf16[256,128], index: 3, kind: input, shape index: {}]
  %s4 = inlined_call_operand.vmem [shape: f32[1,128], index: 4, kind: input, shape index: {}]
  %s5 = inlined_call_operand.vmem [shape: bf16[128,64], index: 5, kind: input, shape index: {}]
  %s6 = inlined_call_operand.vmem [shape: f32[1,64], index: 6, kind: input, shape index: {}]
  %s7 = inlined_call_operand.vmem [shape: bf16[64,32], index: 7, kind: input, shape index: {}]
  %s8 = inlined_call_operand.vmem [shape: f32[1,32], index: 8, kind: input, shape index: {}]
  %s9 = inlined_call_operand.vmem [shape: bf16[32,128], index: 9, kind: input, shape index: {}]
  %s10 = inlined_call_operand.vmem [shape: f32[1,128], index: 10, kind: input, shape index: {}]
  %s11 = inlined_call_operand.hbm [shape: f32[16,128], index: 11, kind: output, shape index: {0}]
  %s12 = inlined_call_operand.hbm [shape: f32[16,128], index: 12, kind: output, shape index: {1}]
  %13 = xla_tuple %s11, %s12
  %s14 = sld [smem:[#allocation0]]
  $region62: #{mlp_forward.1} parent=0
    _
  %s16 = ssub.s32 1, %s14
  %s17 = scalar_select 0, %s16, %s14
  $region1: #{mlp_forward.1} parent=0
    #allocation2 [shape = 'u8[8192]{0}', space=vmem, size = 0x2000, scoped, tag = 'output window, operand 0, single buffered']
    #allocation3 [shape = 's32[1]{0}', space=sflag, size = 0x4, scoped, tag = 'scoped memory for mlp_forward.1']
    #allocation4 [shape = 'u8[8192]{0}', space=vmem, size = 0x2000, scoped, tag = 'output window, operand 1, single buffered']
    #allocation5 [shape = 's32[1]{0}', space=sflag, size = 0x4, scoped, tag = 'scoped memory for mlp_forward.1']
    %18 = vsyncpa [#allocation3], 0
    %19 = vsyncpa [#allocation5], 0
    // Predicated region
    $region2: #{mlp_forward.1} parent=1 // pred_check
      _
    $region3: #{mlp_forward.1} parent=1 // pred_check_branch
      %21 = sbr.rel (0) target = $region5
    $region4: #{mlp_forward.1} parent=1 // pred_region
      _
    $region5: #{mlp_forward.1} parent=1 // pred_fallthru
      _
    // Predicated region
    $region6: #{mlp_forward.1} parent=1 // pred_check
      _
    $region7: #{mlp_forward.1} parent=1 // pred_check_branch
      %23 = sbr.rel (0) target = $region9
    $region8: #{mlp_forward.1} parent=1 // pred_region
      _
    $region9: #{mlp_forward.1} parent=1 // pred_fallthru
      _
    // Predicated region
    $region10: #{mlp_forward.1} parent=1 // pred_check
      _
    $region11: #{mlp_forward.1} parent=1 // pred_check_branch
      %25 = sbr.rel (0) target = $region13
    $region12: #{mlp_forward.1} parent=1 // pred_region
      _
    $region13: #{mlp_forward.1} parent=1 // pred_fallthru
      _
    // Predicated region
    $region14: #{mlp_forward.1} parent=1 // pred_check
      _
    $region15: #{mlp_forward.1} parent=1 // pred_check_branch
      %27 = sbr.rel (0) target = $region17
    $region16: #{mlp_forward.1} parent=1 // pred_region
      _
    $region17: #{mlp_forward.1} parent=1 // pred_fallthru
      _
    // Predicated region
    $region18: #{mlp_forward.1} parent=1 // pred_check
      _
    $region19: #{mlp_forward.1} parent=1 // pred_check_branch
      %29 = sbr.rel (0) target = $region21
    $region20: #{mlp_forward.1} parent=1 // pred_region
      _
    $region21: #{mlp_forward.1} parent=1 // pred_fallthru
      _
    // Predicated region
    $region22: #{mlp_forward.1} parent=1 // pred_check
      _
    $region23: #{mlp_forward.1} parent=1 // pred_check_branch
      %31 = sbr.rel (0) target = $region25
    $region24: #{mlp_forward.1} parent=1 // pred_region
      _
    $region25: #{mlp_forward.1} parent=1 // pred_fallthru
      _
    // Predicated region
    $region26: #{mlp_forward.1} parent=1 // pred_check
      _
    $region27: #{mlp_forward.1} parent=1 // pred_check_branch
      %33 = sbr.rel (0) target = $region29
    $region28: #{mlp_forward.1} parent=1 // pred_region
      _
    $region29: #{mlp_forward.1} parent=1 // pred_fallthru
      _
    // Predicated region
    $region30: #{mlp_forward.1} parent=1 // pred_check
      _
    $region31: #{mlp_forward.1} parent=1 // pred_check_branch
      %35 = sbr.rel (0) target = $region33
    $region32: #{mlp_forward.1} parent=1 // pred_region
      _
    $region33: #{mlp_forward.1} parent=1 // pred_fallthru
      _
    // Predicated region
    $region34: #{mlp_forward.1} parent=1 // pred_check
      _
    $region35: #{mlp_forward.1} parent=1 // pred_check_branch
      %37 = sbr.rel (0) target = $region37
    $region36: #{mlp_forward.1} parent=1 // pred_region
      _
    $region37: #{mlp_forward.1} parent=1 // pred_fallthru
      _
    // Predicated region
    $region38: #{mlp_forward.1} parent=1 // pred_check
      _
    $region39: #{mlp_forward.1} parent=1 // pred_check_branch
      %39 = sbr.rel (0) target = $region41
    $region40: #{mlp_forward.1} parent=1 // pred_region
      _
    $region41: #{mlp_forward.1} parent=1 // pred_fallthru
      _
    // Predicated region
    $region42: #{mlp_forward.1} parent=1 // pred_check
      _
    $region43: #{mlp_forward.1} parent=1 // pred_check_branch
      %41 = sbr.rel (0) target = $region45
    $region44: #{mlp_forward.1} parent=1 // pred_region
      _
    $region45: #{mlp_forward.1} parent=1 // pred_fallthru
      _
    %v43 = vld [vmem:[%s0] sm:$0xff]
    %v44 = vld [vmem:[%s0 + $0x8] sm:$0xff]
    %v45 = vld [vmem:[%s0 + $0x10] sm:$0xff]
    %v46 = vld [vmem:[%s0 + $0x18] sm:$0xf]
    %v47 = vld [vmem:[%s0 + $0x1c] sm:$0xff]
    %v48 = vld [vmem:[%s0 + $0x24] sm:$0xff]
    %v49 = vld [vmem:[%s0 + $0x2c] sm:$0xff]
    %v50 = vld [vmem:[%s0 + $0x34] sm:$0xf]
    %v51 = vld [vmem:[%s1] sm:$0xff]
    %v52 = vld [vmem:[%s1 + $0x8] sm:$0xff]
    %v53 = vld [vmem:[%s1 + $0x10] sm:$0xff]
    %v54 = vld [vmem:[%s1 + $0x18] sm:$0xff]
    %v55 = vld [vmem:[%s1 + $0x20] sm:$0xff]
    %v56 = vld [vmem:[%s1 + $0x28] sm:$0xff]
    %v57 = vld [vmem:[%s1 + $0x30] sm:$0xff]
    %v58 = vld [vmem:[%s1 + $0x38] sm:$0xff]
    %v59 = vld [vmem:[%s1 + $0x40] sm:$0xff]
    %v60 = vld [vmem:[%s1 + $0x48] sm:$0xff]
    %v61 = vld [vmem:[%s1 + $0x50] sm:$0xff]
    %v62 = vld [vmem:[%s1 + $0x58] sm:$0xff]
    %v63 = vld [vmem:[%s1 + $0x60] sm:$0xff]
    %v64 = vld [vmem:[%s1 + $0x68] sm:$0xff]
    %v65 = vld [vmem:[%s1 + $0x70] sm:$0xff]
    %v66 = vld [vmem:[%s1 + $0x78] sm:$0xff]
    %v67 = vld [vmem:[%s1 + $0x80] sm:$0xff]
    %v68 = vld [vmem:[%s1 + $0x88] sm:$0xff]
    %v69 = vld [vmem:[%s1 + $0x90] sm:$0xff]
    %v70 = vld [vmem:[%s1 + $0x98] sm:$0xff]
    %v71 = vld [vmem:[%s1 + $0xa0] sm:$0xff]
    %v72 = vld [vmem:[%s1 + $0xa8] sm:$0xff]
    %v73 = vld [vmem:[%s1 + $0xb0] sm:$0xff]
    %v74 = vld [vmem:[%s1 + $0xb8] sm:$0xff]
    %v75 = vld [vmem:[%s1 + $0xc0] sm:$0xff]
    %v76 = vld [vmem:[%s1 + $0xc8] sm:$0xff]
    %v77 = vld [vmem:[%s1 + $0xd0] sm:$0xff]
    %v78 = vld [vmem:[%s1 + $0xd8] sm:$0xff]
    %v79 = vld [vmem:[%s1 + $0xe0] sm:$0xff]
    %v80 = vld [vmem:[%s1 + $0xe8] sm:$0xff]
    %v81 = vld [vmem:[%s1 + $0xf0] sm:$0xff]
    %v82 = vld [vmem:[%s1 + $0xf8] sm:$0xff]
    %v83 = vld [vmem:[%s1 + $0x100] sm:$0xff]
    %v84 = vld [vmem:[%s1 + $0x108] sm:$0xff]
    %v85 = vld [vmem:[%s1 + $0x110] sm:$0xff]
    %v86 = vld [vmem:[%s1 + $0x118] sm:$0xff]
    %v87 = vld [vmem:[%s1 + $0x120] sm:$0xff]
    %v88 = vld [vmem:[%s1 + $0x128] sm:$0xff]
    %v89 = vld [vmem:[%s1 + $0x130] sm:$0xff]
    %v90 = vld [vmem:[%s1 + $0x138] sm:$0xff]
    %v91 = vld [vmem:[%s1 + $0x140] sm:$0xff]
    %v92 = vld [vmem:[%s1 + $0x148] sm:$0xff]
    %v93 = vld [vmem:[%s1 + $0x150] sm:$0xff]
    %v94 = vld [vmem:[%s1 + $0x158] sm:$0xff]
    %v95 = vld [vmem:[%s1 + $0x160] sm:$0xff]
    %v96 = vld [vmem:[%s1 + $0x168] sm:$0xff]
    %v97 = vld [vmem:[%s1 + $0x170] sm:$0xff]
    %v98 = vld [vmem:[%s1 + $0x178] sm:$0xff]
    %v99 = vld [vmem:[%s1 + $0x180] sm:$0xff]
    %v100 = vld [vmem:[%s1 + $0x188] sm:$0xff]
    %v101 = vld [vmem:[%s1 + $0x190] sm:$0xff]
    %v102 = vld [vmem:[%s1 + $0x198] sm:$0xff]
    %v103 = vld [vmem:[%s1 + $0x1a0] sm:$0xff]
    %v104 = vld [vmem:[%s1 + $0x1a8] sm:$0xff]
    %v105 = vld [vmem:[%s1 + $0x1b0] sm:$0xff]
    %v106 = vld [vmem:[%s1 + $0x1b8] sm:$0xff]
    %v107 = vld [vmem:[%s1 + $0x1c0] sm:$0xff]
    %v108 = vld [vmem:[%s1 + $0x1c8] sm:$0xff]
    %v109 = vld [vmem:[%s1 + $0x1d0] sm:$0xff]
    %v110 = vld [vmem:[%s1 + $0x1d8] sm:$0xff]
    %v111 = vld [vmem:[%s1 + $0x1e0] sm:$0xff]
    %v112 = vld [vmem:[%s1 + $0x1e8] sm:$0xff]
    %v113 = vld [vmem:[%s1 + $0x1f0] sm:$0xff]
    %v114 = vld [vmem:[%s1 + $0x1f8] sm:$0xff]
    %v115 = vld [vmem:[%s1 + $0x200] sm:$0xff]
    %v116 = vld [vmem:[%s1 + $0x208] sm:$0xff]
    %v117 = vld [vmem:[%s1 + $0x210] sm:$0xff]
    %v118 = vld [vmem:[%s1 + $0x218] sm:$0xff]
    %v119 = vld [vmem:[%s1 + $0x220] sm:$0xff]
    %v120 = vld [vmem:[%s1 + $0x228] sm:$0xff]
    %v121 = vld [vmem:[%s1 + $0x230] sm:$0xff]
    %v122 = vld [vmem:[%s1 + $0x238] sm:$0xff]
    %v123 = vld [vmem:[%s1 + $0x240] sm:$0xff]
    %v124 = vld [vmem:[%s1 + $0x248] sm:$0xff]
    %v125 = vld [vmem:[%s1 + $0x250] sm:$0xff]
    %v126 = vld [vmem:[%s1 + $0x258] sm:$0xff]
    %v127 = vld [vmem:[%s1 + $0x260] sm:$0xff]
    %v128 = vld [vmem:[%s1 + $0x268] sm:$0xff]
    %v129 = vld [vmem:[%s1 + $0x270] sm:$0xff]
    %v130 = vld [vmem:[%s1 + $0x278] sm:$0xff]
    %v131 = vld [vmem:[%s1 + $0x280] sm:$0xff]
    %v132 = vld [vmem:[%s1 + $0x288] sm:$0xff]
    %v133 = vld [vmem:[%s1 + $0x290] sm:$0xff]
    %v134 = vld [vmem:[%s1 + $0x298] sm:$0xff]
    %v135 = vld [vmem:[%s1 + $0x2a0] sm:$0xff]
    %v136 = vld [vmem:[%s1 + $0x2a8] sm:$0xff]
    %v137 = vld [vmem:[%s1 + $0x2b0] sm:$0xff]
    %v138 = vld [vmem:[%s1 + $0x2b8] sm:$0xff]
    %v139 = vld [vmem:[%s1 + $0x2c0] sm:$0xff]
    %v140 = vld [vmem:[%s1 + $0x2c8] sm:$0xff]
    %v141 = vld [vmem:[%s1 + $0x2d0] sm:$0xff]
    %v142 = vld [vmem:[%s1 + $0x2d8] sm:$0xff]
    %v143 = vld [vmem:[%s1 + $0x2e0] sm:$0xff]
    %v144 = vld [vmem:[%s1 + $0x2e8] sm:$0xff]
    %v145 = vld [vmem:[%s1 + $0x2f0] sm:$0xff]
    %v146 = vld [vmem:[%s1 + $0x2f8] sm:$0xff]
    %v147 = vld [vmem:[%s1 + $0x300] sm:$0xff]
    %v148 = vld [vmem:[%s1 + $0x308] sm:$0xff]
    %v149 = vld [vmem:[%s1 + $0x310] sm:$0xff]
    %v150 = vld [vmem:[%s1 + $0x318] sm:$0xff]
    %v151 = vld [vmem:[%s1 + $0x320] sm:$0xff]
    %v152 = vld [vmem:[%s1 + $0x328] sm:$0xff]
    %v153 = vld [vmem:[%s1 + $0x330] sm:$0xff]
    %v154 = vld [vmem:[%s1 + $0x338] sm:$0xff]
    %v155 = vld [vmem:[%s1 + $0x340] sm:$0xff]
    %v156 = vld [vmem:[%s1 + $0x348] sm:$0xff]
    %v157 = vld [vmem:[%s1 + $0x350] sm:$0xff]
    %v158 = vld [vmem:[%s1 + $0x358] sm:$0xff]
    %v159 = vld [vmem:[%s1 + $0x360] sm:$0xff]
    %v160 = vld [vmem:[%s1 + $0x368] sm:$0xff]
    %v161 = vld [vmem:[%s1 + $0x370] sm:$0xff]
    %v162 = vld [vmem:[%s1 + $0x378] sm:$0xff]
    %v163 = vld [vmem:[%s2] sm:$0x3]
    %v165 = vlaneseq
    %v166 = vshrl.u32 %v165, 7
    %v167 = vsub.s32 0, %v166
    %v168 = vrot.slane %v163, %v167
    %v169 = vlaneseq
    %v170 = vshrl.u32 %v169, 7
    %v171 = vsub.s32 1, %v170
    %v172 = vrot.slane %v163, %v171
    %v183 = vunpack.c.l.b16 %v43
    %v184 = vunpack.c.h.b16 %v43
    %v185 = vunpack.c.l.b16 %v44
    %v186 = vunpack.c.h.b16 %v44
    %v187 = vunpack.c.l.b16 %v45
    %v188 = vunpack.c.h.b16 %v45
    %v189 = vunpack.c.l.b16 %v46
    %v190 = vunpack.c.l.b16 %v47
    %v191 = vunpack.c.h.b16 %v47
    %v192 = vunpack.c.l.b16 %v48
    %v193 = vunpack.c.h.b16 %v48
    %v194 = vunpack.c.l.b16 %v49
    %v195 = vunpack.c.h.b16 %v49
    %v196 = vunpack.c.l.b16 %v50
    %v197 = vpack.c.b16 %v190, %v183
    %v198 = vpack.c.b16 %v191, %v184
    %v199 = vpack.c.b16 %v192, %v185
    %v200 = vpack.c.b16 %v193, %v186
    %v201 = vpack.c.b16 %v194, %v187
    %v202 = vpack.c.b16 %v195, %v188
    %v203 = vpack.c.b16 %v196, %v189
    %v323 = vunpack.c.l.b16 %v51
    %v324 = vunpack.c.h.b16 %v51
    %v325 = vunpack.c.l.b16 %v52
    %v326 = vunpack.c.h.b16 %v52
    %v327 = vunpack.c.l.b16 %v53
    %v328 = vunpack.c.h.b16 %v53
    %v329 = vunpack.c.l.b16 %v54
    %v330 = vunpack.c.h.b16 %v54
    %v331 = vunpack.c.l.b16 %v55
    %v332 = vunpack.c.h.b16 %v55
    %v333 = vunpack.c.l.b16 %v56
    %v334 = vunpack.c.h.b16 %v56
    %v335 = vunpack.c.l.b16 %v57
    %v336 = vunpack.c.h.b16 %v57
    %v337 = vunpack.c.l.b16 %v58
    %v338 = vunpack.c.h.b16 %v58
    %v339 = vunpack.c.l.b16 %v59
    %v340 = vunpack.c.h.b16 %v59
    %v341 = vunpack.c.l.b16 %v60
    %v342 = vunpack.c.h.b16 %v60
    %v343 = vunpack.c.l.b16 %v61
    %v344 = vunpack.c.h.b16 %v61
    %v345 = vunpack.c.l.b16 %v62
    %v346 = vunpack.c.h.b16 %v62
    %v347 = vunpack.c.l.b16 %v63
    %v348 = vunpack.c.h.b16 %v63
    %v349 = vunpack.c.l.b16 %v64
    %v350 = vunpack.c.h.b16 %v64
    %v351 = vunpack.c.l.b16 %v65
    %v352 = vunpack.c.h.b16 %v65
    %v353 = vunpack.c.l.b16 %v66
    %v354 = vunpack.c.h.b16 %v66
    %v355 = vunpack.c.l.b16 %v67
    %v356 = vunpack.c.h.b16 %v67
    %v357 = vunpack.c.l.b16 %v68
    %v358 = vunpack.c.h.b16 %v68
    %v359 = vunpack.c.l.b16 %v69
    %v360 = vunpack.c.h.b16 %v69
    %v361 = vunpack.c.l.b16 %v70
    %v362 = vunpack.c.h.b16 %v70
    %v363 = vunpack.c.l.b16 %v71
    %v364 = vunpack.c.h.b16 %v71
    %v365 = vunpack.c.l.b16 %v72
    %v366 = vunpack.c.h.b16 %v72
    %v367 = vunpack.c.l.b16 %v73
    %v368 = vunpack.c.h.b16 %v73
    %v369 = vunpack.c.l.b16 %v74
    %v370 = vunpack.c.h.b16 %v74
    %v371 = vunpack.c.l.b16 %v75
    %v372 = vunpack.c.h.b16 %v75
    %v373 = vunpack.c.l.b16 %v76
    %v374 = vunpack.c.h.b16 %v76
    %v375 = vunpack.c.l.b16 %v77
    %v376 = vunpack.c.h.b16 %v77
    %v377 = vunpack.c.l.b16 %v78
    %v378 = vunpack.c.h.b16 %v78
    %v379 = vunpack.c.l.b16 %v79
    %v380 = vunpack.c.h.b16 %v79
    %v381 = vunpack.c.l.b16 %v80
    %v382 = vunpack.c.h.b16 %v80
    %v383 = vunpack.c.l.b16 %v81
    %v384 = vunpack.c.h.b16 %v81
    %v385 = vunpack.c.l.b16 %v82
    %v386 = vunpack.c.h.b16 %v82
    %v387 = vunpack.c.l.b16 %v83
    %v388 = vunpack.c.h.b16 %v83
    %v389 = vunpack.c.l.b16 %v84
    %v390 = vunpack.c.h.b16 %v84
    %v391 = vunpack.c.l.b16 %v85
    %v392 = vunpack.c.h.b16 %v85
    %v393 = vunpack.c.l.b16 %v86
    %v394 = vunpack.c.h.b16 %v86
    %v395 = vunpack.c.l.b16 %v87
    %v396 = vunpack.c.h.b16 %v87
    %v397 = vunpack.c.l.b16 %v88
    %v398 = vunpack.c.h.b16 %v88
    %v399 = vunpack.c.l.b16 %v89
    %v400 = vunpack.c.h.b16 %v89
    %v401 = vunpack.c.l.b16 %v90
    %v402 = vunpack.c.h.b16 %v90
    %v403 = vunpack.c.l.b16 %v91
    %v404 = vunpack.c.h.b16 %v91
    %v405 = vunpack.c.l.b16 %v92
    %v406 = vunpack.c.h.b16 %v92
    %v407 = vunpack.c.l.b16 %v93
    %v408 = vunpack.c.h.b16 %v93
    %v409 = vunpack.c.l.b16 %v94
    %v410 = vunpack.c.h.b16 %v94
    %v411 = vunpack.c.l.b16 %v95
    %v412 = vunpack.c.h.b16 %v95
    %v413 = vunpack.c.l.b16 %v96
    %v414 = vunpack.c.h.b16 %v96
    %v415 = vunpack.c.l.b16 %v97
    %v416 = vunpack.c.h.b16 %v97
    %v417 = vunpack.c.l.b16 %v98
    %v418 = vunpack.c.h.b16 %v98
    %v419 = vunpack.c.l.b16 %v99
    %v420 = vunpack.c.h.b16 %v99
    %v421 = vunpack.c.l.b16 %v100
    %v422 = vunpack.c.h.b16 %v100
    %v423 = vunpack.c.l.b16 %v101
    %v424 = vunpack.c.h.b16 %v101
    %v425 = vunpack.c.l.b16 %v102
    %v426 = vunpack.c.h.b16 %v102
    %v427 = vunpack.c.l.b16 %v103
    %v428 = vunpack.c.h.b16 %v103
    %v429 = vunpack.c.l.b16 %v104
    %v430 = vunpack.c.h.b16 %v104
    %v431 = vunpack.c.l.b16 %v105
    %v432 = vunpack.c.h.b16 %v105
    %v433 = vunpack.c.l.b16 %v106
    %v434 = vunpack.c.h.b16 %v106
    %v435 = vunpack.c.l.b16 %v107
    %v436 = vunpack.c.h.b16 %v107
    %v437 = vunpack.c.l.b16 %v108
    %v438 = vunpack.c.h.b16 %v108
    %v439 = vunpack.c.l.b16 %v109
    %v440 = vunpack.c.h.b16 %v109
    %v441 = vunpack.c.l.b16 %v110
    %v442 = vunpack.c.h.b16 %v110
    %v443 = vunpack.c.l.b16 %v111
    %v444 = vunpack.c.h.b16 %v111
    %v445 = vunpack.c.l.b16 %v112
    %v446 = vunpack.c.h.b16 %v112
    %v447 = vunpack.c.l.b16 %v113
    %v448 = vunpack.c.h.b16 %v113
    %v449 = vunpack.c.l.b16 %v114
    %v450 = vunpack.c.h.b16 %v114
    %v451 = vunpack.c.l.b16 %v115
    %v452 = vunpack.c.h.b16 %v115
    %v453 = vunpack.c.l.b16 %v116
    %v454 = vunpack.c.h.b16 %v116
    %v455 = vunpack.c.l.b16 %v117
    %v456 = vunpack.c.h.b16 %v117
    %v457 = vunpack.c.l.b16 %v118
    %v458 = vunpack.c.h.b16 %v118
    %v459 = vunpack.c.l.b16 %v119
    %v460 = vunpack.c.h.b16 %v119
    %v461 = vunpack.c.l.b16 %v120
    %v462 = vunpack.c.h.b16 %v120
    %v463 = vunpack.c.l.b16 %v121
    %v464 = vunpack.c.h.b16 %v121
    %v465 = vunpack.c.l.b16 %v122
    %v466 = vunpack.c.h.b16 %v122
    %v467 = vunpack.c.l.b16 %v123
    %v468 = vunpack.c.h.b16 %v123
    %v469 = vunpack.c.l.b16 %v124
    %v470 = vunpack.c.h.b16 %v124
    %v471 = vunpack.c.l.b16 %v125
    %v472 = vunpack.c.h.b16 %v125
    %v473 = vunpack.c.l.b16 %v126
    %v474 = vunpack.c.h.b16 %v126
    %v475 = vunpack.c.l.b16 %v127
    %v476 = vunpack.c.h.b16 %v127
    %v477 = vunpack.c.l.b16 %v128
    %v478 = vunpack.c.h.b16 %v128
    %v479 = vunpack.c.l.b16 %v129
    %v480 = vunpack.c.h.b16 %v129
    %v481 = vunpack.c.l.b16 %v130
    %v482 = vunpack.c.h.b16 %v130
    %v483 = vunpack.c.l.b16 %v131
    %v484 = vunpack.c.h.b16 %v131
    %v485 = vunpack.c.l.b16 %v132
    %v486 = vunpack.c.h.b16 %v132
    %v487 = vunpack.c.l.b16 %v133
    %v488 = vunpack.c.h.b16 %v133
    %v489 = vunpack.c.l.b16 %v134
    %v490 = vunpack.c.h.b16 %v134
    %v491 = vunpack.c.l.b16 %v135
    %v492 = vunpack.c.h.b16 %v135
    %v493 = vunpack.c.l.b16 %v136
    %v494 = vunpack.c.h.b16 %v136
    %v495 = vunpack.c.l.b16 %v137
    %v496 = vunpack.c.h.b16 %v137
    %v497 = vunpack.c.l.b16 %v138
    %v498 = vunpack.c.h.b16 %v138
    %v499 = vunpack.c.l.b16 %v139
    %v500 = vunpack.c.h.b16 %v139
    %v501 = vunpack.c.l.b16 %v140
    %v502 = vunpack.c.h.b16 %v140
    %v503 = vunpack.c.l.b16 %v141
    %v504 = vunpack.c.h.b16 %v141
    %v505 = vunpack.c.l.b16 %v142
    %v506 = vunpack.c.h.b16 %v142
    %v507 = vunpack.c.l.b16 %v143
    %v508 = vunpack.c.h.b16 %v143
    %v509 = vunpack.c.l.b16 %v144
    %v510 = vunpack.c.h.b16 %v144
    %v511 = vunpack.c.l.b16 %v145
    %v512 = vunpack.c.h.b16 %v145
    %v513 = vunpack.c.l.b16 %v146
    %v514 = vunpack.c.h.b16 %v146
    %v515 = vunpack.c.l.b16 %v147
    %v516 = vunpack.c.h.b16 %v147
    %v517 = vunpack.c.l.b16 %v148
    %v518 = vunpack.c.h.b16 %v148
    %v519 = vunpack.c.l.b16 %v149
    %v520 = vunpack.c.h.b16 %v149
    %v521 = vunpack.c.l.b16 %v150
    %v522 = vunpack.c.h.b16 %v150
    %v523 = vunpack.c.l.b16 %v151
    %v524 = vunpack.c.h.b16 %v151
    %v525 = vunpack.c.l.b16 %v152
    %v526 = vunpack.c.h.b16 %v152
    %v527 = vunpack.c.l.b16 %v153
    %v528 = vunpack.c.h.b16 %v153
    %v529 = vunpack.c.l.b16 %v154
    %v530 = vunpack.c.h.b16 %v154
    %v531 = vunpack.c.l.b16 %v155
    %v532 = vunpack.c.h.b16 %v155
    %v533 = vunpack.c.l.b16 %v156
    %v534 = vunpack.c.h.b16 %v156
    %v535 = vunpack.c.l.b16 %v157
    %v536 = vunpack.c.h.b16 %v157
    %v537 = vunpack.c.l.b16 %v158
    %v538 = vunpack.c.h.b16 %v158
    %v539 = vunpack.c.l.b16 %v159
    %v540 = vunpack.c.h.b16 %v159
    %v541 = vunpack.c.l.b16 %v160
    %v542 = vunpack.c.h.b16 %v160
    %v543 = vunpack.c.l.b16 %v161
    %v544 = vunpack.c.h.b16 %v161
    %v545 = vunpack.c.l.b16 %v162
    %v546 = vunpack.c.h.b16 %v162
    %v547 = vpack.c.b16 %v325, %v323
    %v548 = vpack.c.b16 %v326, %v324
    %v549 = vpack.c.b16 %v329, %v327
    %v550 = vpack.c.b16 %v330, %v328
    %v551 = vpack.c.b16 %v333, %v331
    %v552 = vpack.c.b16 %v334, %v332
    %v553 = vpack.c.b16 %v337, %v335
    %v554 = vpack.c.b16 %v338, %v336
    %v555 = vpack.c.b16 %v341, %v339
    %v556 = vpack.c.b16 %v342, %v340
    %v557 = vpack.c.b16 %v345, %v343
    %v558 = vpack.c.b16 %v346, %v344
    %v559 = vpack.c.b16 %v349, %v347
    %v560 = vpack.c.b16 %v350, %v348
    %v561 = vpack.c.b16 %v353, %v351
    %v562 = vpack.c.b16 %v354, %v352
    %v563 = vpack.c.b16 %v357, %v355
    %v564 = vpack.c.b16 %v358, %v356
    %v565 = vpack.c.b16 %v361, %v359
    %v566 = vpack.c.b16 %v362, %v360
    %v567 = vpack.c.b16 %v365, %v363
    %v568 = vpack.c.b16 %v366, %v364
    %v569 = vpack.c.b16 %v369, %v367
    %v570 = vpack.c.b16 %v370, %v368
    %v571 = vpack.c.b16 %v373, %v371
    %v572 = vpack.c.b16 %v374, %v372
    %v573 = vpack.c.b16 %v377, %v375
    %v574 = vpack.c.b16 %v378, %v376
    %v575 = vpack.c.b16 %v381, %v379
    %v576 = vpack.c.b16 %v382, %v380
    %v577 = vpack.c.b16 %v385, %v383
    %v578 = vpack.c.b16 %v386, %v384
    %v579 = vpack.c.b16 %v389, %v387
    %v580 = vpack.c.b16 %v390, %v388
    %v581 = vpack.c.b16 %v393, %v391
    %v582 = vpack.c.b16 %v394, %v392
    %v583 = vpack.c.b16 %v397, %v395
    %v584 = vpack.c.b16 %v398, %v396
    %v585 = vpack.c.b16 %v401, %v399
    %v586 = vpack.c.b16 %v402, %v400
    %v587 = vpack.c.b16 %v405, %v403
    %v588 = vpack.c.b16 %v406, %v404
    %v589 = vpack.c.b16 %v409, %v407
    %v590 = vpack.c.b16 %v410, %v408
    %v591 = vpack.c.b16 %v413, %v411
    %v592 = vpack.c.b16 %v414, %v412
    %v593 = vpack.c.b16 %v417, %v415
    %v594 = vpack.c.b16 %v418, %v416
    %v595 = vpack.c.b16 %v421, %v419
    %v596 = vpack.c.b16 %v422, %v420
    %v597 = vpack.c.b16 %v425, %v423
    %v598 = vpack.c.b16 %v426, %v424
    %v599 = vpack.c.b16 %v429, %v427
    %v600 = vpack.c.b16 %v430, %v428
    %v601 = vpack.c.b16 %v433, %v431
    %v602 = vpack.c.b16 %v434, %v432
    %v603 = vpack.c.b16 %v437, %v435
    %v604 = vpack.c.b16 %v438, %v436
    %v605 = vpack.c.b16 %v441, %v439
    %v606 = vpack.c.b16 %v442, %v440
    %v607 = vpack.c.b16 %v445, %v443
    %v608 = vpack.c.b16 %v446, %v444
    %v609 = vpack.c.b16 %v449, %v447
    %v610 = vpack.c.b16 %v450, %v448
    %v611 = vpack.c.b16 %v453, %v451
    %v612 = vpack.c.b16 %v454, %v452
    %v613 = vpack.c.b16 %v457, %v455
    %v614 = vpack.c.b16 %v458, %v456
    %v615 = vpack.c.b16 %v461, %v459
    %v616 = vpack.c.b16 %v462, %v460
    %v617 = vpack.c.b16 %v465, %v463
    %v618 = vpack.c.b16 %v466, %v464
    %v619 = vpack.c.b16 %v469, %v467
    %v620 = vpack.c.b16 %v470, %v468
    %v621 = vpack.c.b16 %v473, %v471
    %v622 = vpack.c.b16 %v474, %v472
    %v623 = vpack.c.b16 %v477, %v475
    %v624 = vpack.c.b16 %v478, %v476
    %v625 = vpack.c.b16 %v481, %v479
    %v626 = vpack.c.b16 %v482, %v480
    %v627 = vpack.c.b16 %v485, %v483
    %v628 = vpack.c.b16 %v486, %v484
    %v629 = vpack.c.b16 %v489, %v487
    %v630 = vpack.c.b16 %v490, %v488
    %v631 = vpack.c.b16 %v493, %v491
    %v632 = vpack.c.b16 %v494, %v492
    %v633 = vpack.c.b16 %v497, %v495
    %v634 = vpack.c.b16 %v498, %v496
    %v635 = vpack.c.b16 %v501, %v499
    %v636 = vpack.c.b16 %v502, %v500
    %v637 = vpack.c.b16 %v505, %v503
    %v638 = vpack.c.b16 %v506, %v504
    %v639 = vpack.c.b16 %v509, %v507
    %v640 = vpack.c.b16 %v510, %v508
    %v641 = vpack.c.b16 %v513, %v511
    %v642 = vpack.c.b16 %v514, %v512
    %v643 = vpack.c.b16 %v517, %v515
    %v644 = vpack.c.b16 %v518, %v516
    %v645 = vpack.c.b16 %v521, %v519
    %v646 = vpack.c.b16 %v522, %v520
    %v647 = vpack.c.b16 %v525, %v523
    %v648 = vpack.c.b16 %v526, %v524
    %v649 = vpack.c.b16 %v529, %v527
    %v650 = vpack.c.b16 %v530, %v528
    %v651 = vpack.c.b16 %v533, %v531
    %v652 = vpack.c.b16 %v534, %v532
    %v653 = vpack.c.b16 %v537, %v535
    %v654 = vpack.c.b16 %v538, %v536
    %v655 = vpack.c.b16 %v541, %v539
    %v656 = vpack.c.b16 %v542, %v540
    %v657 = vpack.c.b16 %v545, %v543
    %v658 = vpack.c.b16 %v546, %v544
    %771 = vmatprep.subr.bf16.mxu0 %v548
    %772 = vmatpush1.bf16.msra.mxu0 %v547
    %773 = vmatprep.subr.bf16.mxu0 %v550
    %774 = vmatpush1.bf16.msra.mxu0 %v549
    %775 = vmatprep.subr.bf16.mxu0 %v552
    %776 = vmatpush1.bf16.msra.mxu0 %v551
    %777 = vmatprep.subr.bf16.mxu0 %v554
    %778 = vmatpush1.bf16.msra.mxu0 %v553
    %779 = vmatprep.subr.bf16.mxu0 %v556
    %780 = vmatpush1.bf16.msra.mxu0 %v555
    %781 = vmatprep.subr.bf16.mxu0 %v558
    %782 = vmatpush1.bf16.msra.mxu0 %v557
    %783 = vmatprep.subr.bf16.mxu0 %v560
    %784 = vmatpush1.bf16.msra.mxu0 %v559
    %785 = vmatprep.subr.bf16.mxu0 %v562
    %786 = vmatpush1.bf16.msra.mxu0 %v561
    %787 = vmatprep.subr.bf16.mxu0 %v564
    %788 = vmatpush1.bf16.msra.mxu0 %v563
    %789 = vmatprep.subr.bf16.mxu0 %v566
    %790 = vmatpush1.bf16.msra.mxu0 %v565
    %791 = vmatprep.subr.bf16.mxu0 %v568
    %792 = vmatpush1.bf16.msra.mxu0 %v567
    %793 = vmatprep.subr.bf16.mxu0 %v570
    %794 = vmatpush1.bf16.msra.mxu0 %v569
    %795 = vmatprep.subr.bf16.mxu0 %v572
    %796 = vmatpush1.bf16.msra.mxu0 %v571
    %797 = vmatprep.subr.bf16.mxu0 %v574
    %798 = vmatpush1.bf16.msra.mxu0 %v573
    %799 = vmatprep.subr.bf16.mxu0 %v576
    %800 = vmatpush1.bf16.msra.mxu0 %v575
    %801 = vmatprep.subr.bf16.mxu0 %v578
    %802 = vmatpush1.bf16.msra.mxu0 %v577
    %803 = vmatprep.mubr.bf16.mxu0 %v198
    %804 = vmatmul.mubr.bf16.gmra.mrb[0].mxu0 %v197
    %v805 = vpop.f32.mrb[0].mxu0
    %v806 = vadd.f32 %v168, %v805
    %v807 = vpop.f32.mrb[0].mxu0
    %v808 = vadd.f32 %v172, %v807
    %v809 = vpop.f32.mrb[0].mxu0
    %v810 = vadd.f32 %v168, %v809
    %v811 = vpop.f32.mrb[0].mxu0
    %v812 = vadd.f32 %v172, %v811
    %813 = vdwg.mxu0
    %814 = vmatprep.subr.bf16.mxu0 %v580
    %815 = vmatpush1.bf16.msra.mxu0 %v579
    %816 = vmatprep.subr.bf16.mxu0 %v582
    %817 = vmatpush1.bf16.msra.mxu0 %v581
    %818 = vmatprep.subr.bf16.mxu0 %v584
    %819 = vmatpush1.bf16.msra.mxu0 %v583
    %820 = vmatprep.subr.bf16.mxu0 %v586
    %821 = vmatpush1.bf16.msra.mxu0 %v585
    %822 = vmatprep.subr.bf16.mxu0 %v588
    %823 = vmatpush1.bf16.msra.mxu0 %v587
    %824 = vmatprep.subr.bf16.mxu0 %v590
    %825 = vmatpush1.bf16.msra.mxu0 %v589
    %826 = vmatprep.subr.bf16.mxu0 %v592
    %827 = vmatpush1.bf16.msra.mxu0 %v591
    %828 = vmatprep.subr.bf16.mxu0 %v594
    %829 = vmatpush1.bf16.msra.mxu0 %v593
    %830 = vmatprep.subr.bf16.mxu0 %v596
    %831 = vmatpush1.bf16.msra.mxu0 %v595
    %832 = vmatprep.subr.bf16.mxu0 %v598
    %833 = vmatpush1.bf16.msra.mxu0 %v597
    %834 = vmatprep.subr.bf16.mxu0 %v600
    %835 = vmatpush1.bf16.msra.mxu0 %v599
    %836 = vmatprep.subr.bf16.mxu0 %v602
    %837 = vmatpush1.bf16.msra.mxu0 %v601
    %838 = vmatprep.subr.bf16.mxu0 %v604
    %839 = vmatpush1.bf16.msra.mxu0 %v603
    %840 = vmatprep.subr.bf16.mxu0 %v606
    %841 = vmatpush1.bf16.msra.mxu0 %v605
    %842 = vmatprep.subr.bf16.mxu0 %v608
    %843 = vmatpush1.bf16.msra.mxu0 %v607
    %844 = vmatprep.subr.bf16.mxu0 %v610
    %845 = vmatpush1.bf16.msra.mxu0 %v609
    %846 = vmatprep.mubr.bf16.mxu0 %v200
    %847 = vmatmul.mubr.bf16.gmra.mrb[0].mxu0 %v199
    %v848 = vpop.f32.mrb[0].mxu0
    %v849 = vadd.f32 %v806, %v848
    %v850 = vpop.f32.mrb[0].mxu0
    %v851 = vadd.f32 %v808, %v850
    %v852 = vpop.f32.mrb[0].mxu0
    %v853 = vadd.f32 %v810, %v852
    %v854 = vpop.f32.mrb[0].mxu0
    %v855 = vadd.f32 %v812, %v854
    %856 = vdwg.mxu0
    %857 = vmatprep.subr.bf16.mxu0 %v612
    %858 = vmatpush1.bf16.msra.mxu0 %v611
    %859 = vmatprep.subr.bf16.mxu0 %v614
    %860 = vmatpush1.bf16.msra.mxu0 %v613
    %861 = vmatprep.subr.bf16.mxu0 %v616
    %862 = vmatpush1.bf16.msra.mxu0 %v615
    %863 = vmatprep.subr.bf16.mxu0 %v618
    %864 = vmatpush1.bf16.msra.mxu0 %v617
    %865 = vmatprep.subr.bf16.mxu0 %v620
    %866 = vmatpush1.bf16.msra.mxu0 %v619
    %867 = vmatprep.subr.bf16.mxu0 %v622
    %868 = vmatpush1.bf16.msra.mxu0 %v621
    %869 = vmatprep.subr.bf16.mxu0 %v624
    %870 = vmatpush1.bf16.msra.mxu0 %v623
    %871 = vmatprep.subr.bf16.mxu0 %v626
    %872 = vmatpush1.bf16.msra.mxu0 %v625
    %873 = vmatprep.subr.bf16.mxu0 %v628
    %874 = vmatpush1.bf16.msra.mxu0 %v627
    %875 = vmatprep.subr.bf16.mxu0 %v630
    %876 = vmatpush1.bf16.msra.mxu0 %v629
    %877 = vmatprep.subr.bf16.mxu0 %v632
    %878 = vmatpush1.bf16.msra.mxu0 %v631
    %879 = vmatprep.subr.bf16.mxu0 %v634
    %880 = vmatpush1.bf16.msra.mxu0 %v633
    %881 = vmatprep.subr.bf16.mxu0 %v636
    %882 = vmatpush1.bf16.msra.mxu0 %v635
    %883 = vmatprep.subr.bf16.mxu0 %v638
    %884 = vmatpush1.bf16.msra.mxu0 %v637
    %885 = vmatprep.subr.bf16.mxu0 %v640
    %886 = vmatpush1.bf16.msra.mxu0 %v639
    %887 = vmatprep.subr.bf16.mxu0 %v642
    %888 = vmatpush1.bf16.msra.mxu0 %v641
    %889 = vmatprep.mubr.bf16.mxu0 %v202
    %890 = vmatmul.mubr.bf16.gmra.mrb[0].mxu0 %v201
    %v891 = vpop.f32.mrb[0].mxu0
    %v892 = vadd.f32 %v849, %v891
    %v893 = vpop.f32.mrb[0].mxu0
    %v894 = vadd.f32 %v851, %v893
    %v895 = vpop.f32.mrb[0].mxu0
    %v896 = vadd.f32 %v853, %v895
    %v897 = vpop.f32.mrb[0].mxu0
    %v898 = vadd.f32 %v855, %v897
    %899 = vdwg.mxu0
    %900 = vmatprep.subr.bf16.mxu0 %v644
    %901 = vmatpush1.bf16.msra.mxu0 %v643
    %902 = vmatprep.subr.bf16.mxu0 %v646
    %903 = vmatpush1.bf16.msra.mxu0 %v645
    %904 = vmatprep.subr.bf16.mxu0 %v648
    %905 = vmatpush1.bf16.msra.mxu0 %v647
    %906 = vmatprep.subr.bf16.mxu0 %v650
    %907 = vmatpush1.bf16.msra.mxu0 %v649
    %908 = vmatprep.subr.bf16.mxu0 %v652
    %909 = vmatpush1.bf16.msra.mxu0 %v651
    %910 = vmatprep.subr.bf16.mxu0 %v654
    %911 = vmatpush1.bf16.msra.mxu0 %v653
    %912 = vmatprep.subr.bf16.mxu0 %v656
    %913 = vmatpush1.bf16.msra.mxu0 %v655
    %914 = vmatprep.subr.bf16.mxu0 %v658
    %915 = vmatpush1.bf16.msra.mxu0 %v657
    %916 = vmatprep.subr.bf16.mxu0 0
    %917 = vmatpush1.bf16.msra.mxu0 0
    %918 = vmatprep.subr.bf16.mxu0 0
    %919 = vmatpush1.bf16.msra.mxu0 0
    %920 = vmatprep.subr.bf16.mxu0 0
    %921 = vmatpush1.bf16.msra.mxu0 0
    %922 = vmatprep.subr.bf16.mxu0 0
    %923 = vmatpush1.bf16.msra.mxu0 0
    %924 = vmatprep.subr.bf16.mxu0 0
    %925 = vmatpush1.bf16.msra.mxu0 0
    %926 = vmatprep.subr.bf16.mxu0 0
    %927 = vmatpush1.bf16.msra.mxu0 0
    %928 = vmatprep.subr.bf16.mxu0 0
    %929 = vmatpush1.bf16.msra.mxu0 0
    %930 = vmatprep.subr.bf16.mxu0 0
    %931 = vmatpush1.bf16.msra.mxu0 0
    %932 = vmatprep.mubr.bf16.mxu0 0
    %933 = vmatmul.mubr.bf16.gmra.mrb[0].mxu0 %v203
    %v934 = vpop.f32.mrb[0].mxu0
    %v935 = vadd.f32 %v892, %v934
    %v936 = vpop.f32.mrb[0].mxu0
    %v937 = vadd.f32 %v894, %v936
    %v938 = vpop.f32.mrb[0].mxu0
    %v939 = vadd.f32 %v896, %v938
    %v940 = vpop.f32.mrb[0].mxu0
    %v941 = vadd.f32 %v898, %v940
    %942 = vdwg.mxu0
    %v943 = vmax.f32 %v935, 0.0
    %v944 = vmax.f32 %v937, 0.0
    %v945 = vmax.f32 %v939, 0.0
    %v946 = vmax.f32 %v941, 0.0
    %v947 = vpack.c.bf16 %v945, %v943
    %v948 = vpack.c.bf16 %v946, %v944
    %v949 = vld [vmem:[%s3] sm:$0xf]
    %v950 = vld [vmem:[%s3 + $0x4] sm:$0xf]
    %v951 = vld [vmem:[%s3 + $0x8] sm:$0xf]
    %v952 = vld [vmem:[%s3 + $0xc] sm:$0xf]
    %v953 = vld [vmem:[%s3 + $0x10] sm:$0xf]
    %v954 = vld [vmem:[%s3 + $0x14] sm:$0xf]
    %v955 = vld [vmem:[%s3 + $0x18] sm:$0xf]
    %v956 = vld [vmem:[%s3 + $0x1c] sm:$0xf]
    %v957 = vld [vmem:[%s3 + $0x20] sm:$0xf]
    %v958 = vld [vmem:[%s3 + $0x24] sm:$0xf]
    %v959 = vld [vmem:[%s3 + $0x28] sm:$0xf]
    %v960 = vld [vmem:[%s3 + $0x2c] sm:$0xf]
    %v961 = vld [vmem:[%s3 + $0x30] sm:$0xf]
    %v962 = vld [vmem:[%s3 + $0x34] sm:$0xf]
    %v963 = vld [vmem:[%s3 + $0x38] sm:$0xf]
    %v964 = vld [vmem:[%s3 + $0x3c] sm:$0xf]
    %v965 = vld [vmem:[%s3 + $0x40] sm:$0xf]
    %v966 = vld [vmem:[%s3 + $0x44] sm:$0xf]
    %v967 = vld [vmem:[%s3 + $0x48] sm:$0xf]
    %v968 = vld [vmem:[%s3 + $0x4c] sm:$0xf]
    %v969 = vld [vmem:[%s3 + $0x50] sm:$0xf]
    %v970 = vld [vmem:[%s3 + $0x54] sm:$0xf]
    %v971 = vld [vmem:[%s3 + $0x58] sm:$0xf]
    %v972 = vld [vmem:[%s3 + $0x5c] sm:$0xf]
    %v973 = vld [vmem:[%s3 + $0x60] sm:$0xf]
    %v974 = vld [vmem:[%s3 + $0x64] sm:$0xf]
    %v975 = vld [vmem:[%s3 + $0x68] sm:$0xf]
    %v976 = vld [vmem:[%s3 + $0x6c] sm:$0xf]
    %v977 = vld [vmem:[%s3 + $0x70] sm:$0xf]
    %v978 = vld [vmem:[%s3 + $0x74] sm:$0xf]
    %v979 = vld [vmem:[%s3 + $0x78] sm:$0xf]
    %v980 = vld [vmem:[%s3 + $0x7c] sm:$0xf]
    %v981 = vld [vmem:[%s4] sm:$0x1]
    %v983 = vlaneseq
    %v984 = vshrl.u32 %v983, 7
    %v985 = vsub.s32 0, %v984
    %v986 = vrot.slane %v981, %v985
    %v1020 = vunpack.c.l.b16 %v949
    %v1021 = vunpack.c.l.b16 %v950
    %v1022 = vunpack.c.l.b16 %v951
    %v1023 = vunpack.c.l.b16 %v952
    %v1024 = vunpack.c.l.b16 %v953
    %v1025 = vunpack.c.l.b16 %v954
    %v1026 = vunpack.c.l.b16 %v955
    %v1027 = vunpack.c.l.b16 %v956
    %v1028 = vunpack.c.l.b16 %v957
    %v1029 = vunpack.c.l.b16 %v958
    %v1030 = vunpack.c.l.b16 %v959
    %v1031 = vunpack.c.l.b16 %v960
    %v1032 = vunpack.c.l.b16 %v961
    %v1033 = vunpack.c.l.b16 %v962
    %v1034 = vunpack.c.l.b16 %v963
    %v1035 = vunpack.c.l.b16 %v964
    %v1036 = vunpack.c.l.b16 %v965
    %v1037 = vunpack.c.l.b16 %v966
    %v1038 = vunpack.c.l.b16 %v967
    %v1039 = vunpack.c.l.b16 %v968
    %v1040 = vunpack.c.l.b16 %v969
    %v1041 = vunpack.c.l.b16 %v970
    %v1042 = vunpack.c.l.b16 %v971
    %v1043 = vunpack.c.l.b16 %v972
    %v1044 = vunpack.c.l.b16 %v973
    %v1045 = vunpack.c.l.b16 %v974
    %v1046 = vunpack.c.l.b16 %v975
    %v1047 = vunpack.c.l.b16 %v976
    %v1048 = vunpack.c.l.b16 %v977
    %v1049 = vunpack.c.l.b16 %v978
    %v1050 = vunpack.c.l.b16 %v979
    %v1051 = vunpack.c.l.b16 %v980
    %v1052 = vpack.c.b16 %v1021, %v1020
    %v1053 = vpack.c.b16 %v1023, %v1022
    %v1054 = vpack.c.b16 %v1025, %v1024
    %v1055 = vpack.c.b16 %v1027, %v1026
    %v1056 = vpack.c.b16 %v1029, %v1028
    %v1057 = vpack.c.b16 %v1031, %v1030
    %v1058 = vpack.c.b16 %v1033, %v1032
    %v1059 = vpack.c.b16 %v1035, %v1034
    %v1060 = vpack.c.b16 %v1037, %v1036
    %v1061 = vpack.c.b16 %v1039, %v1038
    %v1062 = vpack.c.b16 %v1041, %v1040
    %v1063 = vpack.c.b16 %v1043, %v1042
    %v1064 = vpack.c.b16 %v1045, %v1044
    %v1065 = vpack.c.b16 %v1047, %v1046
    %v1066 = vpack.c.b16 %v1049, %v1048
    %v1067 = vpack.c.b16 %v1051, %v1050
    %1084 = vmatprep.subr.bf16.mxu0 0
    %1085 = vmatpush1.bf16.msra.mxu0 %v1052
    %1086 = vmatprep.subr.bf16.mxu0 0
    %1087 = vmatpush1.bf16.msra.mxu0 %v1053
    %1088 = vmatprep.subr.bf16.mxu0 0
    %1089 = vmatpush1.bf16.msra.mxu0 %v1054
    %1090 = vmatprep.subr.bf16.mxu0 0
    %1091 = vmatpush1.bf16.msra.mxu0 %v1055
    %1092 = vmatprep.subr.bf16.mxu0 0
    %1093 = vmatpush1.bf16.msra.mxu0 %v1056
    %1094 = vmatprep.subr.bf16.mxu0 0
    %1095 = vmatpush1.bf16.msra.mxu0 %v1057
    %1096 = vmatprep.subr.bf16.mxu0 0
    %1097 = vmatpush1.bf16.msra.mxu0 %v1058
    %1098 = vmatprep.subr.bf16.mxu0 0
    %1099 = vmatpush1.bf16.msra.mxu0 %v1059
    %1100 = vmatprep.subr.bf16.mxu0 0
    %1101 = vmatpush1.bf16.msra.mxu0 %v1060
    %1102 = vmatprep.subr.bf16.mxu0 0
    %1103 = vmatpush1.bf16.msra.mxu0 %v1061
    %1104 = vmatprep.subr.bf16.mxu0 0
    %1105 = vmatpush1.bf16.msra.mxu0 %v1062
    %1106 = vmatprep.subr.bf16.mxu0 0
    %1107 = vmatpush1.bf16.msra.mxu0 %v1063
    %1108 = vmatprep.subr.bf16.mxu0 0
    %1109 = vmatpush1.bf16.msra.mxu0 %v1064
    %1110 = vmatprep.subr.bf16.mxu0 0
    %1111 = vmatpush1.bf16.msra.mxu0 %v1065
    %1112 = vmatprep.subr.bf16.mxu0 0
    %1113 = vmatpush1.bf16.msra.mxu0 %v1066
    %1114 = vmatprep.subr.bf16.mxu0 0
    %1115 = vmatpush1.bf16.msra.mxu0 %v1067
    %1116 = vmatprep.mubr.bf16.mxu0 %v948
    %1117 = vmatmul.mubr.bf16.gmra.mrb[0].mxu0 %v947
    %v1118 = vpop.f32.mrb[0].mxu0
    %v1119 = vadd.f32 %v986, %v1118
    %v1120 = vpop.f32.mrb[0].mxu0
    %v1121 = vpop.f32.mrb[0].mxu0
    %v1122 = vadd.f32 %v986, %v1121
    %v1123 = vpop.f32.mrb[0].mxu0
    %1124 = vdwg.mxu0
    %v1125 = vmax.f32 %v1119, 0.0
    %v1126 = vmax.f32 %v1122, 0.0
    %v1127 = vpack.c.bf16 %v1126, %v1125
    %v1128 = vld [vmem:[%s5] sm:$0xf]
    %v1129 = vld [vmem:[%s5 + $0x4] sm:$0xf]
    %v1130 = vld [vmem:[%s5 + $0x8] sm:$0xf]
    %v1131 = vld [vmem:[%s5 + $0xc] sm:$0xf]
    %v1132 = vld [vmem:[%s5 + $0x10] sm:$0xf]
    %v1133 = vld [vmem:[%s5 + $0x14] sm:$0xf]
    %v1134 = vld [vmem:[%s5 + $0x18] sm:$0xf]
    %v1135 = vld [vmem:[%s5 + $0x1c] sm:$0xf]
    %v1136 = vld [vmem:[%s5 + $0x20] sm:$0xf]
    %v1137 = vld [vmem:[%s5 + $0x24] sm:$0xf]
    %v1138 = vld [vmem:[%s5 + $0x28] sm:$0xf]
    %v1139 = vld [vmem:[%s5 + $0x2c] sm:$0xf]
    %v1140 = vld [vmem:[%s5 + $0x30] sm:$0xf]
    %v1141 = vld [vmem:[%s5 + $0x34] sm:$0xf]
    %v1142 = vld [vmem:[%s5 + $0x38] sm:$0xf]
    %v1143 = vld [vmem:[%s5 + $0x3c] sm:$0xf]
    %v1144 = vld [vmem:[%s6] sm:$0x1]
    %v1146 = vlaneseq
    %v1147 = vshrl.u32 %v1146, 7
    %v1148 = vsub.s32 0, %v1147
    %v1149 = vrot.slane %v1144, %v1148
    %v1167 = vunpack.c.l.b16 %v1128
    %v1168 = vunpack.c.l.b16 %v1129
    %v1169 = vunpack.c.l.b16 %v1130
    %v1170 = vunpack.c.l.b16 %v1131
    %v1171 = vunpack.c.l.b16 %v1132
    %v1172 = vunpack.c.l.b16 %v1133
    %v1173 = vunpack.c.l.b16 %v1134
    %v1174 = vunpack.c.l.b16 %v1135
    %v1175 = vunpack.c.l.b16 %v1136
    %v1176 = vunpack.c.l.b16 %v1137
    %v1177 = vunpack.c.l.b16 %v1138
    %v1178 = vunpack.c.l.b16 %v1139
    %v1179 = vunpack.c.l.b16 %v1140
    %v1180 = vunpack.c.l.b16 %v1141
    %v1181 = vunpack.c.l.b16 %v1142
    %v1182 = vunpack.c.l.b16 %v1143
    %v1183 = vpack.c.b16 %v1168, %v1167
    %v1184 = vpack.c.b16 %v1170, %v1169
    %v1185 = vpack.c.b16 %v1172, %v1171
    %v1186 = vpack.c.b16 %v1174, %v1173
    %v1187 = vpack.c.b16 %v1176, %v1175
    %v1188 = vpack.c.b16 %v1178, %v1177
    %v1189 = vpack.c.b16 %v1180, %v1179
    %v1190 = vpack.c.b16 %v1182, %v1181
    %1199 = vmatprep.subr.bf16.mxu0 0
    %1200 = vmatpush1.bf16.msra.mxu0 %v1183
    %1201 = vmatprep.subr.bf16.mxu0 0
    %1202 = vmatpush1.bf16.msra.mxu0 %v1184
    %1203 = vmatprep.subr.bf16.mxu0 0
    %1204 = vmatpush1.bf16.msra.mxu0 %v1185
    %1205 = vmatprep.subr.bf16.mxu0 0
    %1206 = vmatpush1.bf16.msra.mxu0 %v1186
    %1207 = vmatprep.subr.bf16.mxu0 0
    %1208 = vmatpush1.bf16.msra.mxu0 %v1187
    %1209 = vmatprep.subr.bf16.mxu0 0
    %1210 = vmatpush1.bf16.msra.mxu0 %v1188
    %1211 = vmatprep.subr.bf16.mxu0 0
    %1212 = vmatpush1.bf16.msra.mxu0 %v1189
    %1213 = vmatprep.subr.bf16.mxu0 0
    %1214 = vmatpush1.bf16.msra.mxu0 %v1190
    %1215 = vmatprep.subr.bf16.mxu0 0
    %1216 = vmatpush1.bf16.msra.mxu0 0
    %1217 = vmatprep.subr.bf16.mxu0 0
    %1218 = vmatpush1.bf16.msra.mxu0 0
    %1219 = vmatprep.subr.bf16.mxu0 0
    %1220 = vmatpush1.bf16.msra.mxu0 0
    %1221 = vmatprep.subr.bf16.mxu0 0
    %1222 = vmatpush1.bf16.msra.mxu0 0
    %1223 = vmatprep.subr.bf16.mxu0 0
    %1224 = vmatpush1.bf16.msra.mxu0 0
    %1225 = vmatprep.subr.bf16.mxu0 0
    %1226 = vmatpush1.bf16.msra.mxu0 0
    %1227 = vmatprep.subr.bf16.mxu0 0
    %1228 = vmatpush1.bf16.msra.mxu0 0
    %1229 = vmatprep.subr.bf16.mxu0 0
    %1230 = vmatpush1.bf16.msra.mxu0 0
    %1231 = vmatprep.mubr.bf16.mxu0 0
    %1232 = vmatmul.mubr.bf16.gmra.mrb[0].mxu0 %v1127
    %v1233 = vpop.f32.mrb[0].mxu0
    %v1234 = vadd.f32 %v1149, %v1233
    %v1235 = vpop.f32.mrb[0].mxu0
    %v1236 = vpop.f32.mrb[0].mxu0
    %v1237 = vadd.f32 %v1149, %v1236
    %v1238 = vpop.f32.mrb[0].mxu0
    %1239 = vdwg.mxu0
    %v1240 = vmax.f32 %v1234, 0.0
    %v1241 = vmax.f32 %v1237, 0.0
    %v1242 = vpack.c.bf16 %v1241, %v1240
    %v1243 = vld [vmem:[%s7] sm:$0xf]
    %v1244 = vld [vmem:[%s7 + $0x4] sm:$0xf]
    %v1245 = vld [vmem:[%s7 + $0x8] sm:$0xf]
    %v1246 = vld [vmem:[%s7 + $0xc] sm:$0xf]
    %v1247 = vld [vmem:[%s7 + $0x10] sm:$0xf]
    %v1248 = vld [vmem:[%s7 + $0x14] sm:$0xf]
    %v1249 = vld [vmem:[%s7 + $0x18] sm:$0xf]
    %v1250 = vld [vmem:[%s7 + $0x1c] sm:$0xf]
    %v1251 = vld [vmem:[%s8] sm:$0x1]
    %v1253 = vlaneseq
    %v1254 = vshrl.u32 %v1253, 7
    %v1255 = vsub.s32 0, %v1254
    %v1256 = vrot.slane %v1251, %v1255
    %v1266 = vunpack.c.l.b16 %v1243
    %v1267 = vunpack.c.l.b16 %v1244
    %v1268 = vunpack.c.l.b16 %v1245
    %v1269 = vunpack.c.l.b16 %v1246
    %v1270 = vunpack.c.l.b16 %v1247
    %v1271 = vunpack.c.l.b16 %v1248
    %v1272 = vunpack.c.l.b16 %v1249
    %v1273 = vunpack.c.l.b16 %v1250
    %v1274 = vpack.c.b16 %v1267, %v1266
    %v1275 = vpack.c.b16 %v1269, %v1268
    %v1276 = vpack.c.b16 %v1271, %v1270
    %v1277 = vpack.c.b16 %v1273, %v1272
    %vm1282 = vcmask 523264
    %v1284 = vsel %vm1282, %v1242, 0
    %1286 = vmatprep.subr.bf16.mxu0 0
    %1287 = vmatpush1.bf16.msra.mxu0 %v1274
    %1288 = vmatprep.subr.bf16.mxu0 0
    %1289 = vmatpush1.bf16.msra.mxu0 %v1275
    %1290 = vmatprep.subr.bf16.mxu0 0
    %1291 = vmatpush1.bf16.msra.mxu0 %v1276
    %1292 = vmatprep.subr.bf16.mxu0 0
    %1293 = vmatpush1.bf16.msra.mxu0 %v1277
    %1294 = vmatprep.subr.bf16.mxu0 0
    %1295 = vmatpush1.bf16.msra.mxu0 0
    %1296 = vmatprep.subr.bf16.mxu0 0
    %1297 = vmatpush1.bf16.msra.mxu0 0
    %1298 = vmatprep.subr.bf16.mxu0 0
    %1299 = vmatpush1.bf16.msra.mxu0 0
    %1300 = vmatprep.subr.bf16.mxu0 0
    %1301 = vmatpush1.bf16.msra.mxu0 0
    %1302 = vmatprep.subr.bf16.mxu0 0
    %1303 = vmatpush1.bf16.msra.mxu0 0
    %1304 = vmatprep.subr.bf16.mxu0 0
    %1305 = vmatpush1.bf16.msra.mxu0 0
    %1306 = vmatprep.subr.bf16.mxu0 0
    %1307 = vmatpush1.bf16.msra.mxu0 0
    %1308 = vmatprep.subr.bf16.mxu0 0
    %1309 = vmatpush1.bf16.msra.mxu0 0
    %1310 = vmatprep.subr.bf16.mxu0 0
    %1311 = vmatpush1.bf16.msra.mxu0 0
    %1312 = vmatprep.subr.bf16.mxu0 0
    %1313 = vmatpush1.bf16.msra.mxu0 0
    %1314 = vmatprep.subr.bf16.mxu0 0
    %1315 = vmatpush1.bf16.msra.mxu0 0
    %1316 = vmatprep.subr.bf16.mxu0 0
    %1317 = vmatpush1.bf16.msra.mxu0 0
    %1318 = vmatprep.mubr.bf16.mxu0 0
    %1319 = vmatmul.mubr.bf16.gmra.mrb[0].mxu0 %v1284
    %v1320 = vpop.f32.mrb[0].mxu0
    %v1321 = vadd.f32 %v1256, %v1320
    %v1322 = vpop.f32.mrb[0].mxu0
    %v1323 = vpop.f32.mrb[0].mxu0
    %v1324 = vadd.f32 %v1256, %v1323
    %v1325 = vpop.f32.mrb[0].mxu0
    %1326 = vdwg.mxu0
    %v1327 = vmax.f32 %v1321, 0.0
    %v1328 = vmax.f32 %v1324, 0.0
    %v1329 = vpack.c.bf16 %v1328, %v1327
    %v1330 = vld [vmem:[%s9] sm:$0xf]
    %v1331 = vld [vmem:[%s9 + $0x4] sm:$0xf]
    %v1332 = vld [vmem:[%s9 + $0x8] sm:$0xf]
    %v1333 = vld [vmem:[%s9 + $0xc] sm:$0xf]
    %v1334 = vld [vmem:[%s10] sm:$0x1]
    %v1336 = vlaneseq
    %v1337 = vshrl.u32 %v1336, 7
    %v1338 = vsub.s32 0, %v1337
    %v1339 = vrot.slane %v1334, %v1338
    %v1345 = vunpack.c.l.b16 %v1330
    %v1346 = vunpack.c.l.b16 %v1331
    %v1347 = vunpack.c.l.b16 %v1332
    %v1348 = vunpack.c.l.b16 %v1333
    %v1349 = vpack.c.b16 %v1346, %v1345
    %v1350 = vpack.c.b16 %v1348, %v1347
    %vm1353 = vcmask 261120
    %v1355 = vsel %vm1353, %v1329, 0
    %1357 = vmatprep.subr.bf16.mxu0 0
    %1358 = vmatpush1.bf16.msra.mxu0 %v1349
    %1359 = vmatprep.subr.bf16.mxu0 0
    %1360 = vmatpush1.bf16.msra.mxu0 %v1350
    %1361 = vmatprep.subr.bf16.mxu0 0
    %1362 = vmatpush1.bf16.msra.mxu0 0
    %1363 = vmatprep.subr.bf16.mxu0 0
    %1364 = vmatpush1.bf16.msra.mxu0 0
    %1365 = vmatprep.subr.bf16.mxu0 0
    %1366 = vmatpush1.bf16.msra.mxu0 0
    %1367 = vmatprep.subr.bf16.mxu0 0
    %1368 = vmatpush1.bf16.msra.mxu0 0
    %1369 = vmatprep.subr.bf16.mxu0 0
    %1370 = vmatpush1.bf16.msra.mxu0 0
    %1371 = vmatprep.subr.bf16.mxu0 0
    %1372 = vmatpush1.bf16.msra.mxu0 0
    %1373 = vmatprep.subr.bf16.mxu0 0
    %1374 = vmatpush1.bf16.msra.mxu0 0
    %1375 = vmatprep.subr.bf16.mxu0 0
    %1376 = vmatpush1.bf16.msra.mxu0 0
    %1377 = vmatprep.subr.bf16.mxu0 0
    %1378 = vmatpush1.bf16.msra.mxu0 0
    %1379 = vmatprep.subr.bf16.mxu0 0
    %1380 = vmatpush1.bf16.msra.mxu0 0
    %1381 = vmatprep.subr.bf16.mxu0 0
    %1382 = vmatpush1.bf16.msra.mxu0 0
    %1383 = vmatprep.subr.bf16.mxu0 0
    %1384 = vmatpush1.bf16.msra.mxu0 0
    %1385 = vmatprep.subr.bf16.mxu0 0
    %1386 = vmatpush1.bf16.msra.mxu0 0
    %1387 = vmatprep.subr.bf16.mxu0 0
    %1388 = vmatpush1.bf16.msra.mxu0 0
    %1389 = vmatprep.mubr.bf16.mxu0 0
    %1390 = vmatmul.mubr.bf16.gmra.mrb[0].mxu0 %v1355
    %v1391 = vpop.f32.mrb[0].mxu0
    %v1392 = vadd.f32 %v1339, %v1391
    %v1393 = vpop.f32.mrb[0].mxu0
    %v1394 = vpop.f32.mrb[0].mxu0
    %v1395 = vadd.f32 %v1339, %v1394
    %v1396 = vpop.f32.mrb[0].mxu0
    %1397 = vdwg.mxu0
    %1398 = vst [vmem:[#allocation2] sm:$0xff] %v1392
    %1399 = vst [vmem:[#allocation2 + $0x8] sm:$0xff] %v1395
    %v1400 = vlaneseq
    %v1401 = vand.u32 %v1400, 127
    %vm1402 = vcmp.lt.s32.totalorder %v1401, 10
    %v1403 = vsel %vm1402, %v1392, -1e+30
    %v1404 = vsel %vm1402, %v1395, -1e+30
    %1405 = vmax.xlane.f32.xlu0 %v1403
    %v1406 = vpop.xlane.xlu0 %1405
    %1407 = vmax.xlane.f32.xlu0 %v1404
    %v1408 = vpop.xlane.xlu0 %1407
    %v1409 = vsub.f32 %v1392, %v1406
    %v1410 = vsub.f32 %v1395, %v1408
    %v1411 = vmul.f32 %v1409, 1.442695
    %v1412 = vpow.pop %v1411
    %v1413 = vmul.f32 %v1410, 1.442695
    %v1414 = vpow.pop %v1413
    %v1415 = vsel %vm1402, %v1412, 0.0
    %v1416 = vsel %vm1402, %v1414, 0.0
    %1417 = vadd.xlane.f32.xlu0 %v1415
    %v1418 = vpop.xlane.xlu0 %1417
    %1419 = vadd.xlane.f32.xlu0 %v1416
    %v1420 = vpop.xlane.xlu0 %1419
    %v1421 = vlog2.pop %v1418
    %v1422 = vmul.f32 %v1421, 0.6931472
    %v1423 = vlog2.pop %v1420
    %v1424 = vmul.f32 %v1423, 0.6931472
    %v1425 = vsub.f32 %v1409, %v1422
    %v1426 = vsub.f32 %v1410, %v1424
    %1427 = vst [vmem:[#allocation4] sm:$0xff] %v1425
    %1428 = vst [vmem:[#allocation4 + $0x8] sm:$0xff] %v1426
    // Predicated region
    $region46: #{mlp_forward.1} parent=1 // pred_check
      _
    $region47: #{mlp_forward.1} parent=1 // pred_check_branch
      %1430 = sbr.rel (0) target = $region49
    $region48: #{mlp_forward.1} parent=1 // pred_region
      %s1432 = ssub.s32 256, 256
      %1433 = vsyncadd [#allocation3], %s1432
      %s1434 = sshll.u32 [#allocation2], 4
      %s1435 = int_to_ptr.vmem [resolvable:$true] %s1434
      %1440 = dma.vmem_to_hbm [thread:$0]  %s1435, 256, %s11, [#allocation3], 128, 128, 8
    $region49: #{mlp_forward.1} parent=1 // pred_fallthru
      _
    // Predicated region
    $region50: #{mlp_forward.1} parent=1 // pred_check
      _
    $region51: #{mlp_forward.1} parent=1 // pred_check_branch
      %1442 = sbr.rel (0) target = $region53
    $region52: #{mlp_forward.1} parent=1 // pred_region
      %s1444 = ssub.s32 256, 256
      %1445 = vsyncadd [#allocation5], %s1444
      %s1446 = sshll.u32 [#allocation4], 4
      %s1447 = int_to_ptr.vmem [resolvable:$true] %s1446
      %1452 = dma.vmem_to_hbm [thread:$0]  %s1447, 256, %s12, [#allocation5], 128, 128, 8
    $region53: #{mlp_forward.1} parent=1 // pred_fallthru
      _
    // Predicated region
    $region54: #{mlp_forward.1} parent=1 // pred_check
      _
    $region55: #{mlp_forward.1} parent=1 // pred_check_branch
      %1454 = sbr.rel (0) target = $region57
    $region56: #{mlp_forward.1} parent=1 // pred_region
      %1455 = dma.done [#allocation3], 256
    $region57: #{mlp_forward.1} parent=1 // pred_fallthru
      _
    // Predicated region
    $region58: #{mlp_forward.1} parent=1 // pred_check
      _
    $region59: #{mlp_forward.1} parent=1 // pred_check_branch
      %1457 = sbr.rel (0) target = $region61
    $region60: #{mlp_forward.1} parent=1 // pred_region
      %1458 = dma.done [#allocation5], 256
    $region61: #{mlp_forward.1} parent=1 // pred_fallthru
      _
    %1459 = vsyncpa [#allocation3], 1
    %1460 = vsyncpa [#allocation5], 1

</llo_original>
